<compile_context>
chip_gen: v6e
topology: v6e:2x2x1
jax: 0.10.0
libtpu: 0.0.40
codegen_flags: <defaults>
</compile_context>

<pallas_src>
import functools

import jax
import jax.numpy as jnp
import numpy as np
from jax import lax
from jax.experimental import pallas as pl
from jax.experimental.pallas import tpu as pltpu

NEG_SLOPE = 0.05
BN_EPS = 1e-5


# --------------------------- device / tiling helpers ------------------------

def _vmem_capacity_bytes():
    try:
        return int(pltpu.get_tpu_info().vmem_capacity_bytes)
    except Exception:
        return 64 * 1024 * 1024          # conservative default (v7x per-TC VMEM)


def _pick_tile_rows(ho, bytes_per_out_row, vmem_budget):
    """Largest divisor of `ho` whose block stays inside the VMEM budget."""
    limit = max(1, vmem_budget // max(1, bytes_per_out_row))
    best = 1
    for cand in range(1, ho + 1):
        if ho % cand == 0 and cand <= limit:
            best = cand
    return best


# ------------------------------- kernels ------------------------------------

def _maxpool_kernel(x_ref, o_ref, *, th, wo, c):
    # x_ref: (2*th, Wo, 2*C) -- column pairs packed into the lane dim
    xm = x_ref[...].reshape(th, 2, wo, 2 * c)
    v = jnp.maximum(xm[:, 0], xm[:, 1])                    # vertical 2 -> 1
    o_ref[...] = jnp.maximum(v[:, :, :c], v[:, :, c:])     # horizontal 2 -> 1


def _dwconv_s2_kernel(x_ref, xb_ref, wf_ref, b_ref, o_ref, *, th, wo, c):
    # x_ref : (2*th, Wop, 2*C) packed padded rows [2*t*th, 2*t*th + 2*th)
    # xb_ref: (Wop, 2*C)       boundary padded row 2*(t+1)*th (1-row halo)
    # wf_ref: (9*C, C)         depthwise+pointwise+BN folded weight
    # b_ref : (1, C)           folded bias (dw bias, pw bias, BN) -- f32
    wop = wo + 1
    xm = x_ref[...].reshape(th, 2, wop, 2 * c)
    r0 = xm[:, 0]                                          # padded rows 2i
    r1 = xm[:, 1]                                          # padded rows 2i+1
    last = xb_ref[...][None]                               # padded row 2*th (local)
    if th > 1:
        r2 = jnp.concatenate([xm[1:, 0], last], axis=0)    # padded rows 2i+2
    else:
        r2 = last

    taps = []
    for r in (r0, r1, r2):                                 # kh = 0, 1, 2
        taps.append(r[:, :wo, :c])                         # kw = 0 -> col 2j
        taps.append(r[:, :wo, c:])                         # kw = 1 -> col 2j+1
        taps.append(r[:, 1:, :c])                          # kw = 2 -> col 2j+2

    # im2col (th*Wo, 9*C) @ folded weight (9*C, C) -- single MXU matmul.
    patches = jnp.concatenate(taps, axis=-1).reshape(th * wo, 9 * c)
    y = jnp.dot(patches, wf_ref[...], preferred_element_type=jnp.float32)
    y = y + b_ref[...]                                     # single folded bias add
    y = jnp.where(y >= 0.0, y, NEG_SLOPE * y)              # LeakyReLU(0.05)
    o_ref[...] = y.reshape(th, wo, c).astype(o_ref.dtype)


# ------------------------------- wrappers ------------------------------------

def downsample_x2_maxpool(x_nchw, tile_ho=None):
    n, c, h, w = x_nchw.shape
    assert h % 2 == 0 and w % 2 == 0, "even H, W required (stride-2 downsample)"
    ho, wo = h // 2, w // 2

    x = jnp.transpose(x_nchw, (0, 2, 3, 1))                # NCHW -> NHWC
    x = x.reshape(n, h, wo, 2 * c)                         # pack col pairs (free)
    esize = x.dtype.itemsize

    vmem_cap = _vmem_capacity_bytes()
    if tile_ho is None:
        row_bytes = (2 * wo * 2 * c + wo * c) * esize      # 2 in rows + 1 out row
        tile_ho = _pick_tile_rows(ho, row_bytes, vmem_cap // 8)
    assert ho % tile_ho == 0
    t = ho // tile_ho

    kern = functools.partial(_maxpool_kernel, th=tile_ho, wo=wo, c=c)
    out = pl.pallas_call(
        kern,
        out_shape=jax.ShapeDtypeStruct((n, ho, wo, c), x.dtype),
        grid=(n, t),
        in_specs=[pl.BlockSpec((None, 2 * tile_ho, wo, 2 * c),
                               lambda b, i: (b, i, 0, 0))],
        out_specs=pl.BlockSpec((None, tile_ho, wo, c), lambda b, i: (b, i, 0, 0)),
        compiler_params=pltpu.CompilerParams(
            dimension_semantics=("parallel", "parallel"),
            vmem_limit_bytes=int(vmem_cap // 2)),
        cost_estimate=pl.CostEstimate(
            flops=3 * n * ho * wo * c,
            transcendentals=0,
            bytes_accessed=(x.size + n * ho * wo * c) * esize),
    )(x)
    return jnp.transpose(out, (0, 3, 1, 2))                # NHWC -> NCHW


def _fold_dwsep_bn(p, c, dtype):
    """Fold depthwise 3x3, 1x1 conv, both biases and eval-mode BN into (W, b)."""
    w_dw = jnp.transpose(p["w_dw_torch"][:, 0], (1, 2, 0)).reshape(9, c)   # (9, Cin)
    w_pw = jnp.transpose(p["w_pw_torch"][:, :, 0, 0], (1, 0))              # (Cin, Cout)
    scale = p["bn_gamma"] * lax.rsqrt(p["bn_var"] + BN_EPS)                # (Cout,)
    w_fold = (w_dw[:, :, None] * w_pw[None, :, :]).reshape(9 * c, c) * scale[None, :]
    bias = (p["b_dw"] @ w_pw + p["b_pw"] - p["bn_mean"]) * scale + p["bn_beta"]
    return w_fold.astype(dtype), bias.reshape(1, c).astype(jnp.float32)


def downsample_x2_conv(x_nchw, params, tile_ho=None, compute_dtype=None):
    n, c, h, w = x_nchw.shape
    assert h % 2 == 0 and w % 2 == 0, "even H, W required (stride-2 downsample)"
    ho, wo = h // 2, w // 2
    wop = wo + 1
    cdtype = compute_dtype or jnp.float32   # use jnp.bfloat16 on v6e/v7x for the fast path
    esize = jnp.dtype(cdtype).itemsize

    w_fold, bias = _fold_dwsep_bn(params, c, cdtype)

    x = jnp.transpose(x_nchw, (0, 2, 3, 1)).astype(cdtype)          # NCHW -> NHWC
    xp = jnp.pad(x, ((0, 0), (1, 1), (1, 1), (0, 0)))               # padding = 1
    xp = xp.reshape(n, h + 2, wop, 2 * c)                           # pack col pairs (free)

    vmem_cap = _vmem_capacity_bytes()
    if tile_ho is None:
        row_bytes = (2 * wop * 2 * c) * esize + wo * c * 4          # in rows + f32 out row
        tile_ho = _pick_tile_rows(ho, row_bytes, vmem_cap // 8)
    assert ho % tile_ho == 0
    t = ho // tile_ho

    # One extra boundary row per row-tile -> halo without overlapping blocks.
    x_bnd = xp[:, 2 * tile_ho::2 * tile_ho][:, :t]                   # (N, T, Wop, 2C)

    kern = functools.partial(_dwconv_s2_kernel, th=tile_ho, wo=wo, c=c)
    flops = 2 * n * ho * wo * (9 * c) * c + 4 * n * ho * wo * c
    bytes_acc = (xp.size + x_bnd.size + w_fold.size) * esize + (bias.size + n * ho * wo * c) * 4

    out = pl.pallas_call(
        kern,
        out_shape=jax.ShapeDtypeStruct((n, ho, wo, c), jnp.float32),
        grid=(n, t),
        in_specs=[
            pl.BlockSpec((None, 2 * tile_ho, wop, 2 * c), lambda b, i: (b, i, 0, 0)),
            pl.BlockSpec((None, None, wop, 2 * c), lambda b, i: (b, i, 0, 0)),
            pl.BlockSpec((9 * c, c), lambda b, i: (0, 0)),
            pl.BlockSpec((1, c), lambda b, i: (0, 0)),
        ],
        out_specs=pl.BlockSpec((None, tile_ho, wo, c), lambda b, i: (b, i, 0, 0)),
        compiler_params=pltpu.CompilerParams(
            dimension_semantics=("parallel", "parallel"),
            vmem_limit_bytes=int(vmem_cap // 2)),
        cost_estimate=pl.CostEstimate(
            flops=flops, transcendentals=0, bytes_accessed=bytes_acc),
    )(xp, x_bnd, w_fold, bias)
    return jnp.transpose(out, (0, 3, 1, 2))                          # NHWC -> NCHW


def downsample_x2_block(x_nchw, mode, params=None, **kw):
    if mode == "max_pool":
        return downsample_x2_maxpool(x_nchw, **kw)
    elif mode == "convolution":
        return downsample_x2_conv(x_nchw, params, **kw)
    raise ValueError(f"Strange downsample mode: {mode!r}")


# ----------------------- deterministic parameter init -----------------------

def init_conv_params(key, c):
    k1, k2, k3, k4, k5, k6 = jax.random.split(key, 6)
    return {
        "w_dw_torch": 0.2 * jax.random.normal(k1, (c, 1, 3, 3), jnp.float32),
        "b_dw": 0.1 * jax.random.normal(k2, (c,), jnp.float32),
        "w_pw_torch": 0.2 * jax.random.normal(k3, (c, c, 1, 1), jnp.float32),
        "b_pw": 0.1 * jax.random.normal(k4, (c,), jnp.float32),
        "bn_gamma": 1.0 + 0.1 * jax.random.normal(k5, (c,), jnp.float32),
        "bn_beta": 0.1 * jax.random.normal(k6, (c,), jnp.float32),
        "bn_mean": 0.05 * jnp.arange(c, dtype=jnp.float32),
        "bn_var": 1.0 + 0.1 * jnp.arange(c, dtype=jnp.float32),
    }


# ----------------------------- references -----------------------------------

def reference_maxpool(x_nchw):
    return lax.reduce_window(x_nchw, -jnp.inf, lax.max,
                             (1, 1, 2, 2), (1, 1, 2, 2), "VALID")


def reference_conv(x_nchw, p):
    x = jnp.transpose(x_nchw, (0, 2, 3, 1)).astype(jnp.float32)
    c = x.shape[-1]
    dn = ("NHWC", "HWIO", "NHWC")
    w_dw_hwio = jnp.transpose(p["w_dw_torch"], (2, 3, 1, 0))        # (3,3,1,C)
    y = lax.conv_general_dilated(x, w_dw_hwio, (2, 2), ((1, 1), (1, 1)),
                                 dimension_numbers=dn, feature_group_count=c,
                                 precision=lax.Precision.HIGHEST)
    y = y + p["b_dw"]
    w_pw_hwio = jnp.transpose(p["w_pw_torch"], (2, 3, 1, 0))        # (1,1,Cin,Cout)
    y = lax.conv_general_dilated(y, w_pw_hwio, (1, 1), "VALID",
                                 dimension_numbers=dn,
                                 precision=lax.Precision.HIGHEST)
    y = y + p["b_pw"]
    y = (y - p["bn_mean"]) / jnp.sqrt(p["bn_var"] + BN_EPS) * p["bn_gamma"] + p["bn_beta"]
    y = jnp.where(y >= 0, y, NEG_SLOPE * y)
    return jnp.transpose(y, (0, 3, 1, 2))


# ------------------------------- main ----------------------------------------

if __name__ == "__main__":
    key = jax.random.PRNGKey(0)
    kx, kp = jax.random.split(key)
    N, C, H, W = 2, 4, 16, 16
    x = jax.random.normal(kx, (N, C, H, W), jnp.float32)            # PyTorch NCHW input

    # --- max_pool mode (auto tile + forced multi-tile to exercise row tiling) ---
    ref_mp = reference_maxpool(x)
    for th in (None, 2):
        out_mp = jax.block_until_ready(downsample_x2_block(x, "max_pool", tile_ho=th))
        assert out_mp.shape == (N, C, H // 2, W // 2)
        np.testing.assert_allclose(np.asarray(out_mp), np.asarray(ref_mp),
                                   rtol=1e-6, atol=1e-6)

    # --- convolution mode (auto tile + forced multi-tile to exercise the halo) ---
    params = init_conv_params(kp, C)
    ref_cv = reference_conv(x, params)
    for th in (None, 2):
        out_cv = jax.block_until_ready(
            downsample_x2_block(x, "convolution", params, tile_ho=th))
        assert out_cv.shape == (N, C, H // 2, W // 2)
        np.testing.assert_allclose(np.asarray(out_cv), np.asarray(ref_cv),
                                   rtol=2e-2, atol=2e-2)

    # --- bf16 activation/weight fast path (v6e/v7x), f32 MXU accumulation ---
    out_bf = jax.block_until_ready(
        downsample_x2_block(x, "convolution", params, compute_dtype=jnp.bfloat16))
    np.testing.assert_allclose(np.asarray(out_bf), np.asarray(ref_cv),
                               rtol=1e-1, atol=1e-1)

    print("KERNEL_OK")
</pallas_src>

<mosaic_0001>
module attributes {stable_mosaic.version = 11 : i64} {
  func.func @_maxpool_kernel(%arg0: i32, %arg1: i32, %arg2: memref<1x16x8x8xf32, #tpu.memory_space<vmem>>, %arg3: memref<1x8x8x4xf32, #tpu.memory_space<vmem>>) attributes {dimension_semantics = [#tpu.dimension_semantics<parallel>, #tpu.dimension_semantics<parallel>], iteration_bounds = array<i64: 2, 1>, scalar_prefetch = 0 : i64, scratch_operands = 0 : i64, tpu.core_type = #tpu.core_type<tc>, window_params = [{transform_indices = @transform_0, window_bounds = array<i64: 1, 16, 8, 8>}, {transform_indices = @transform_1, window_bounds = array<i64: 1, 8, 8, 4>}]} {
    %c0 = arith.constant 0 : index
    %c0_0 = arith.constant 0 : index
    %c0_1 = arith.constant 0 : index
    %c0_2 = arith.constant 0 : index
    %0 = vector.load %arg2[%c0, %c0_0, %c0_1, %c0_2] : memref<1x16x8x8xf32, #tpu.memory_space<vmem>>, vector<1x16x8x8xf32>
    %1 = vector.shape_cast %0 : vector<1x16x8x8xf32> to vector<16x8x8xf32>
    %2 = vector.shape_cast %1 : vector<16x8x8xf32> to vector<8x2x8x8xf32>
    %3 = vector.extract_strided_slice %2 {offsets = [0, 0, 0, 0], sizes = [8, 1, 8, 8], strides = [1, 1, 1, 1]} : vector<8x2x8x8xf32> to vector<8x1x8x8xf32>
    %4 = vector.shape_cast %3 : vector<8x1x8x8xf32> to vector<8x8x8xf32>
    %5 = vector.extract_strided_slice %2 {offsets = [0, 1, 0, 0], sizes = [8, 1, 8, 8], strides = [1, 1, 1, 1]} : vector<8x2x8x8xf32> to vector<8x1x8x8xf32>
    %6 = vector.shape_cast %5 : vector<8x1x8x8xf32> to vector<8x8x8xf32>
    %7 = arith.maximumf %4, %6 : vector<8x8x8xf32>
    %8 = vector.extract_strided_slice %7 {offsets = [0, 0, 0], sizes = [8, 8, 4], strides = [1, 1, 1]} : vector<8x8x8xf32> to vector<8x8x4xf32>
    %9 = vector.extract_strided_slice %7 {offsets = [0, 0, 4], sizes = [8, 8, 4], strides = [1, 1, 1]} : vector<8x8x8xf32> to vector<8x8x4xf32>
    %10 = arith.maximumf %8, %9 : vector<8x8x4xf32>
    %c0_3 = arith.constant 0 : index
    %c0_4 = arith.constant 0 : index
    %c0_5 = arith.constant 0 : index
    %c0_6 = arith.constant 0 : index
    %11 = vector.load %arg3[%c0_3, %c0_4, %c0_5, %c0_6] : memref<1x8x8x4xf32, #tpu.memory_space<vmem>>, vector<1x8x8x4xf32>
    %12 = vector.shape_cast %11 : vector<1x8x8x4xf32> to vector<8x8x4xf32>
    %13 = vector.shape_cast %10 : vector<8x8x4xf32> to vector<1x8x8x4xf32>
    tpu.vector_store %arg3[%c0_3, %c0_4, %c0_5, %c0_6], %13 {strides = array<i32>} : memref<1x8x8x4xf32, #tpu.memory_space<vmem>>, vector<1x8x8x4xf32>,
    return
  }
  func.func @transform_0(%arg0: i32, %arg1: i32) -> (i32, i32, i32, i32) {
    %c0_i32 = arith.constant 0 : i32
    %c0_i32_0 = arith.constant 0 : i32
    %c0_i32_1 = arith.constant 0 : i32
    return %arg0, %arg1, %c0_i32, %c0_i32_0 : i32, i32, i32, i32
  }
  func.func @transform_1(%arg0: i32, %arg1: i32) -> (i32, i32, i32, i32) {
    %c0_i32 = arith.constant 0 : i32
    %c0_i32_0 = arith.constant 0 : i32
    %c0_i32_1 = arith.constant 0 : i32
    return %arg0, %arg1, %c0_i32, %c0_i32_0 : i32, i32, i32, i32
  }
}

</mosaic_0001>

<llo_original>
// kernel: tpu_custom_call.1
$region0: #{tpu_custom_call.1}
  #allocation0 [shape = 'u32[]', space=smem, size = 0x4, offset = 0x4, fixed_abs, tag = 'smem constant byte address 0x4 - core index']
  #allocation1 [shape = 'u32[144,128]{1,0:T(1,128)}', space=vmem, size = 0x12000, scoped, tag = 'internal scratch']
  %s0 = inlined_call_operand.vmem [shape: f32[2,16,8,8], index: 0, kind: input, shape index: {}]
  %s1 = inlined_call_operand.vmem [shape: f32[2,8,8,4], index: 1, kind: output, shape index: {}]
  %s2 = sld [smem:[#allocation0]]
  $region37: #{tpu_custom_call.1} parent=0
    _
  %s4 = ssub.s32 1, %s2
  %s5 = scalar_select 0, %s4, %s2
  loop: start=0, step=1, limit=4
  $region2: #{tpu_custom_call.1} parent=0 // loop_pre_header
    _
  $region3: #{tpu_custom_call.1} parent=0 // loop_header
    %s7 = sphi 0, %s11
    %p8 = scmp.ge.s32.totalorder %s7, 4
    %s14 = sphi 0, %s26
    %s15 = sphi 0, %s22
    %s16 = sphi 0, %s14
    %s17 = sphi 0, %s15
    %s18 = sphi 0, %s16
    %s19 = sphi 0, %s17
    %s31 = sphi 0, %s33
    %s34 = sphi 0, %s31
    %s35 = sphi 0, %s34
    %s51 = sphi 0, %s35
    %s59 = sphi 0, %s61
    %s62 = sphi 0, %s59
    %s63 = sphi 0, %s62
    %s79 = sphi 0, %s63
  $region4: #{tpu_custom_call.1} parent=0 // loop_header_branch
    %10 = sbr.rel (%p8) target = $region8
  $region5: #{tpu_custom_call.1} parent=0 // loop_body
    %s12 = ssub.s32 %s7, 1
    %s13 = ssub.s32 %s7, 2
    %s20 = sadd.s32 1, %s15
    %p21 = scmp.ge.s32.totalorder %s20, 1
    %s22 = scalar_select %p21, 0, %s20
    %s23 = sadd.s32 1, %s14
    %s24 = scalar_select %p21, %s23, %s14
    %p25 = scmp.ge.s32.totalorder %s24, 2
    %s26 = scalar_select %p25, 0, %s24
    %s27 = ssub.s32 %s14, %s26
    %s28 = ssub.s32 %s15, %s22
    %s29 = sor.u32 %s27, %s28
    %p30 = scmp.eq.s32.totalorder %s29, 0
    %s32 = sadd.s32 %s31, 1
    %s33 = scalar_select %p30, %s31, %s32
    %p36 = pneg %p30
    %p37 = scmp.eq.s32.totalorder %s7, 1
    %p38 = por %p36, %p37
    %p39 = scmp.ne.s32.totalorder %s31, %s34
    %p40 = scmp.eq.s32.totalorder %s7, 0
    %p41 = por %p39, %p40
    %p42 = scmp.ne.s32.totalorder %s31, %s34
    %p43 = scmp.eq.s32.totalorder %s12, 1
    %p44 = por %p42, %p43
    %p45 = scmp.ne.s32.totalorder %s34, %s35
    %p46 = scmp.eq.s32.totalorder %s12, 0
    %p47 = por %p45, %p46
    %p48 = scmp.ne.s32.totalorder %s34, %s35
    %p49 = scmp.eq.s32.totalorder %s13, 1
    %p50 = por %p48, %p49
    %p52 = scmp.ne.s32.totalorder %s35, %s51
    %p53 = scmp.eq.s32.totalorder %s13, 0
    %p54 = por %p52, %p53
    %s55 = ssub.s32 %s14, %s26
    %s56 = ssub.s32 %s15, %s22
    %s57 = sor.u32 %s55, %s56
    %p58 = scmp.eq.s32.totalorder %s57, 0
    %s60 = sadd.s32 %s59, 1
    %s61 = scalar_select %p58, %s59, %s60
    %p64 = pneg %p58
    %p65 = scmp.eq.s32.totalorder %s7, 1
    %p66 = por %p64, %p65
    %p67 = scmp.ne.s32.totalorder %s59, %s62
    %p68 = scmp.eq.s32.totalorder %s7, 0
    %p69 = por %p67, %p68
    %p70 = scmp.ne.s32.totalorder %s59, %s62
    %p71 = scmp.eq.s32.totalorder %s12, 1
    %p72 = por %p70, %p71
    %p73 = scmp.ne.s32.totalorder %s62, %s63
    %p74 = scmp.eq.s32.totalorder %s12, 0
    %p75 = por %p73, %p74
    %p76 = scmp.ne.s32.totalorder %s62, %s63
    %p77 = scmp.eq.s32.totalorder %s13, 1
    %p78 = por %p76, %p77
    %p80 = scmp.ne.s32.totalorder %s63, %s79
    %p81 = scmp.eq.s32.totalorder %s13, 0
    %p82 = por %p80, %p81
    %p83 = scmp.le.s32.totalorder 1, %s7
    %p84 = scmp.lt.s32.totalorder %s7, 3
    %p85 = pnand %p83, %p84
    %p86 = pneg %p85
    // Predicated region
    $region9: #{tpu_custom_call.1} parent=5 // pred_check
      _
    $region10: #{tpu_custom_call.1} parent=5 // pred_check_branch
      %88 = sbr.rel (%p85) target = $region12
    $region11: #{tpu_custom_call.1} parent=5 // pred_region
      %s89 = ssub.s32 %s7, 1
    $region12: #{tpu_custom_call.1} parent=5 // pred_fallthru
      _
    %p90 = scmp.lt.s32.totalorder %s7, 2
    // Predicated region
    $region13: #{tpu_custom_call.1} parent=5 // pred_check
      %p91 = pneg %p90
    $region14: #{tpu_custom_call.1} parent=5 // pred_check_branch
      %93 = sbr.rel (%p91) target = $region16
    $region15: #{tpu_custom_call.1} parent=5 // pred_region
      // Predicated region
      $region17: #{tpu_custom_call.1} parent=15 // pred_check
        %p94 = pneg %p41
      $region18: #{tpu_custom_call.1} parent=15 // pred_check_branch
        %96 = sbr.rel (%p94) target = $region20
      $region19: #{tpu_custom_call.1} parent=15 // pred_region
        %s97 = smul.u32 16, %s15
        %p98 = scmp.lt.s32.totalorder %s14, 1
        %s99 = scalar_select %p98, %s14, 1
        %p100 = scmp.lt.s32.totalorder %s97, 15
        %s101 = scalar_select %p100, %s97, 15
        %s102 = smul.addr %s99, 16
        %s103 = sadd.s32 %s101, %s102
        %s104 = smul.addr %s103, 8
        %s105 = scalar_lea.vmem %s0, %s104
        %s106 = smul.u32 16, %s15
      $region20: #{tpu_custom_call.1} parent=15 // pred_fallthru
        _
    $region16: #{tpu_custom_call.1} parent=5 // pred_fallthru
      _
    %p107 = scmp.le.s32.totalorder 1, %s7
    %p108 = scmp.lt.s32.totalorder %s7, 3
    %p109 = pnand %p107, %p108
    %p110 = pneg %p109
    // Predicated region
    $region21: #{tpu_custom_call.1} parent=5 // pred_check
      _
    $region22: #{tpu_custom_call.1} parent=5 // pred_check_branch
      %112 = sbr.rel (%p109) target = $region24
    $region23: #{tpu_custom_call.1} parent=5 // pred_region
      %s113 = ssub.s32 %s7, 1
      %s114 = smul.u32 16, %s17
      %p115 = scmp.lt.s32.totalorder %s16, 1
      %s116 = scalar_select %p115, %s16, 1
      %p117 = scmp.lt.s32.totalorder %s114, 15
      %s118 = scalar_select %p117, %s114, 15
      %s119 = smul.addr %s116, 16
      %s120 = sadd.s32 %s118, %s119
      %s121 = smul.addr %s120, 8
      %s122 = scalar_lea.vmem %s0, %s121
      %p123 = pneg %p47
      %p124 = pneg %p44
      %p125 = pneg %p75
      %p126 = pneg %p72
      %s127 = smul.u32 8, %s17
      %p128 = scmp.lt.s32.totalorder %s16, 1
      %s129 = scalar_select %p128, %s16, 1
      %p130 = scmp.lt.s32.totalorder %s127, 7
      %s131 = scalar_select %p130, %s127, 7
      %s132 = smul.addr %s129, 8
      %s133 = sadd.s32 %s131, %s132
      %s134 = smul.addr %s133, 8
      %s135 = scalar_lea.vmem %s1, %s134
      %s136 = smul.u32 16, %s17
      %p137 = scmp.lt.s32.totalorder %s16, 1
      %s138 = scalar_select %p137, %s16, 1
      %p139 = scmp.lt.s32.totalorder %s136, 15
      %s140 = scalar_select %p139, %s136, 15
      %s141 = smul.addr %s138, 16
      %s142 = sadd.s32 %s140, %s141
      %s143 = smul.addr %s142, 8
      %s144 = scalar_lea.vmem %s0, %s143
      %s145 = smul.u32 16, %s17
      %s146 = smul.u32 8, %s17
      %p147 = scmp.lt.s32.totalorder %s16, 1
      %s148 = scalar_select %p147, %s16, 1
      %p149 = scmp.lt.s32.totalorder %s146, 7
      %s150 = scalar_select %p149, %s146, 7
      %s151 = smul.addr %s148, 8
      %s152 = sadd.s32 %s150, %s151
      %s153 = smul.addr %s152, 8
      %s154 = scalar_lea.vmem %s1, %s153
      %s155 = smul.u32 8, %s17
      %v156 = vld [vmem:[%s144] sm:$0xff]
      %v157 = vld [vmem:[%s144 + $0x8] sm:$0xff]
      %v158 = vld [vmem:[%s144 + $0x10] sm:$0xff]
      %v159 = vld [vmem:[%s144 + $0x18] sm:$0xff]
      %v160 = vld [vmem:[%s144 + $0x20] sm:$0xff]
      %v161 = vld [vmem:[%s144 + $0x28] sm:$0xff]
      %v162 = vld [vmem:[%s144 + $0x30] sm:$0xff]
      %v163 = vld [vmem:[%s144 + $0x38] sm:$0xff]
      %v164 = vld [vmem:[%s144 + $0x40] sm:$0xff]
      %v165 = vld [vmem:[%s144 + $0x48] sm:$0xff]
      %v166 = vld [vmem:[%s144 + $0x50] sm:$0xff]
      %v167 = vld [vmem:[%s144 + $0x58] sm:$0xff]
      %v168 = vld [vmem:[%s144 + $0x60] sm:$0xff]
      %v169 = vld [vmem:[%s144 + $0x68] sm:$0xff]
      %v170 = vld [vmem:[%s144 + $0x70] sm:$0xff]
      %v171 = vld [vmem:[%s144 + $0x78] sm:$0xff]
      %v172 = vmax.f32 %v156, %v157
      %v173 = vmax.f32 %v158, %v159
      %v174 = vmax.f32 %v160, %v161
      %v175 = vmax.f32 %v162, %v163
      %v176 = vmax.f32 %v164, %v165
      %v177 = vmax.f32 %v166, %v167
      %v178 = vmax.f32 %v168, %v169
      %v179 = vmax.f32 %v170, %v171
      %188 = vrot.lane.b32.xlu0 %v172, 124
      %v189 = vpop.permute.xlu0 %188
      %190 = vrot.lane.b32.xlu0 %v173, 124
      %v191 = vpop.permute.xlu0 %190
      %192 = vrot.lane.b32.xlu0 %v174, 124
      %v193 = vpop.permute.xlu0 %192
      %194 = vrot.lane.b32.xlu0 %v175, 124
      %v195 = vpop.permute.xlu0 %194
      %196 = vrot.lane.b32.xlu0 %v176, 124
      %v197 = vpop.permute.xlu0 %196
      %198 = vrot.lane.b32.xlu0 %v177, 124
      %v199 = vpop.permute.xlu0 %198
      %200 = vrot.lane.b32.xlu0 %v178, 124
      %v201 = vpop.permute.xlu0 %200
      %202 = vrot.lane.b32.xlu0 %v179, 124
      %v203 = vpop.permute.xlu0 %202
      %v212 = vmax.f32 %v172, %v189
      %v213 = vmax.f32 %v173, %v191
      %v214 = vmax.f32 %v174, %v193
      %v215 = vmax.f32 %v175, %v195
      %v216 = vmax.f32 %v176, %v197
      %v217 = vmax.f32 %v177, %v199
      %v218 = vmax.f32 %v178, %v201
      %v219 = vmax.f32 %v179, %v203
      %vm220 = vcmask 31744
      %221 = vst.msk [vmem:[%s154] sm:$0xff] %vm220, %v212
      %222 = vst.msk [vmem:[%s154 + $0x8] sm:$0xff] %vm220, %v213
      %223 = vst.msk [vmem:[%s154 + $0x10] sm:$0xff] %vm220, %v214
      %224 = vst.msk [vmem:[%s154 + $0x18] sm:$0xff] %vm220, %v215
      %225 = vst.msk [vmem:[%s154 + $0x20] sm:$0xff] %vm220, %v216
      %226 = vst.msk [vmem:[%s154 + $0x28] sm:$0xff] %vm220, %v217
      %227 = vst.msk [vmem:[%s154 + $0x30] sm:$0xff] %vm220, %v218
      %228 = vst.msk [vmem:[%s154 + $0x38] sm:$0xff] %vm220, %v219
      %s229 = smul.u32 8, %s17
      %p230 = scmp.lt.s32.totalorder %s16, 1
      %s231 = scalar_select %p230, %s16, 1
      %p232 = scmp.lt.s32.totalorder %s229, 7
      %s233 = scalar_select %p232, %s229, 7
      %s234 = smul.addr %s231, 8
      %s235 = sadd.s32 %s233, %s234
      %s236 = smul.addr %s235, 8
      %s237 = scalar_lea.vmem %s1, %s236
      // Predicated region
      $region25: #{tpu_custom_call.1} parent=23 // pred_check
        %p238 = pneg %p72
      $region26: #{tpu_custom_call.1} parent=23 // pred_check_branch
        %240 = sbr.rel (%p238) target = $region28
      $region27: #{tpu_custom_call.1} parent=23 // pred_region
        %s241 = smul.u32 8, %s17
      $region28: #{tpu_custom_call.1} parent=23 // pred_fallthru
        _
    $region24: #{tpu_custom_call.1} parent=5 // pred_fallthru
      _
    %p242 = scmp.le.s32.totalorder 2, %s7
    // Predicated region
    $region29: #{tpu_custom_call.1} parent=5 // pred_check
      %p243 = pneg %p242
    $region30: #{tpu_custom_call.1} parent=5 // pred_check_branch
      %245 = sbr.rel (%p243) target = $region32
    $region31: #{tpu_custom_call.1} parent=5 // pred_region
      %s246 = ssub.s32 %s7, 2
      // Predicated region
      $region33: #{tpu_custom_call.1} parent=31 // pred_check
        %p247 = pneg %p78
      $region34: #{tpu_custom_call.1} parent=31 // pred_check_branch
        %249 = sbr.rel (%p247) target = $region36
      $region35: #{tpu_custom_call.1} parent=31 // pred_region
        %s250 = smul.u32 8, %s19
        %p251 = scmp.lt.s32.totalorder %s18, 1
        %s252 = scalar_select %p251, %s18, 1
        %p253 = scmp.lt.s32.totalorder %s250, 7
        %s254 = scalar_select %p253, %s250, 7
        %s255 = smul.addr %s252, 8
        %s256 = sadd.s32 %s254, %s255
        %s257 = smul.addr %s256, 8
        %s258 = scalar_lea.vmem %s1, %s257
      $region36: #{tpu_custom_call.1} parent=31 // pred_fallthru
        _
    $region32: #{tpu_custom_call.1} parent=5 // pred_fallthru
      _
  $region6: #{tpu_custom_call.1} parent=0 // loop_footer
    %s11 = sadd.s32 1, %s7
  $region7: #{tpu_custom_call.1} parent=0 // loop_footer_branch
    %6 = sbr.rel target = $region3
  $region8: #{tpu_custom_call.1} parent=0 // loop_exit
    _

</llo_original>
